<compile_context>
chip_gen: v7x
topology: tpu7x:2x2x1
jax: 0.10.0
libtpu: 0.0.40
codegen_flags: <defaults>
</compile_context>

<pallas_src>
import functools

import jax
import jax.numpy as jnp
from jax.experimental import pallas as pl
from jax.experimental.pallas import tpu as pltpu


_HW_TILE_MAX = 32768                      # max lanes per HW tile (multiple of 128)
_TARGET_BLOCK_BYTES = 4 * 1024 * 1024     # ~4 MiB per input block (x2 double buffer)
_TARGET_ROW_BLOCKS = 8                    # aim for >= this many row blocks (v7x megacore)
_MIN_HW_FOR_KERNEL = 128                  # below this, padded rows waste the vreg/DMA


def _round_up(v, m):
    return ((v + m - 1) // m) * m


def _make_kernel(hw_total, thw, need_mask, num_k):
    inv_hw = 1.0 / float(hw_total)
    # Valid lanes in the (only possibly ragged) last HW tile -- Python constant.
    tail_valid = hw_total - (num_k - 1) * thw

    def _accum(x, mx_sc, sum_sc):
        # max in native dtype; sum accumulated in f32 without widening the tile.
        mx_sc[...] = jnp.maximum(
            mx_sc[...],
            jnp.max(x, axis=-1, keepdims=True).astype(jnp.float32),
        )
        sum_sc[...] = sum_sc[...] + jnp.sum(
            x, axis=-1, keepdims=True, dtype=jnp.float32
        )

    def kernel(x_ref, out_ref, mx_sc, sum_sc):
        k = pl.program_id(1)

        @pl.when(k == 0)
        def _init():
            mx_sc[...] = jnp.full_like(mx_sc, -jnp.inf)
            sum_sc[...] = jnp.zeros_like(sum_sc)

        x = x_ref[...]                               # (tm, thw), native dtype

        if need_mask:
            # Only the last HW tile is ragged: keep full tiles on the
            # unmasked fast path (no iota / compare / select VALU work).
            @pl.when(k < num_k - 1)
            def _full():
                _accum(x, mx_sc, sum_sc)

            @pl.when(k == num_k - 1)
            def _ragged():
                col = jax.lax.broadcasted_iota(jnp.int32, x.shape, 1)
                valid = col < tail_valid             # compile-time constant bound
                xm = jnp.where(valid, x, jnp.array(-jnp.inf, dtype=x.dtype))
                xs = jnp.where(valid, x, jnp.zeros_like(x))
                mx_sc[...] = jnp.maximum(
                    mx_sc[...],
                    jnp.max(xm, axis=-1, keepdims=True).astype(jnp.float32),
                )
                sum_sc[...] = sum_sc[...] + jnp.sum(
                    xs, axis=-1, keepdims=True, dtype=jnp.float32
                )
        else:
            _accum(x, mx_sc, sum_sc)

        @pl.when(k == num_k - 1)
        def _finalize():
            out_ref[...] = jnp.concatenate(
                [mx_sc[...], sum_sc[...] * inv_hw], axis=-1
            ).astype(out_ref.dtype)

    return kernel


def _choose_tiles(nc, hw, itemsize):
    # HW tile: full row if it fits, else balanced 128-aligned chunks so the
    # masked tail tile is as full as possible (second, "arbitrary" grid axis).
    if hw <= _HW_TILE_MAX:
        thw = hw
    else:
        num_k = pl.cdiv(hw, _HW_TILE_MAX)
        thw = _round_up(pl.cdiv(hw, num_k), 128)

    # Row tile: multiple of the sublane packing (8 f32 / 16 bf16), sized to
    # ~4 MiB per block, and capped so the "parallel" row axis has >= ~8
    # blocks when NC is large (lets v7x shard rows across both TensorCores).
    sub = 8 * max(1, 4 // itemsize)
    rows_budget = (_TARGET_BLOCK_BYTES // max(1, thw * itemsize)) // sub * sub
    rows_budget = max(sub, rows_budget)
    rows_cap = max(sub, _round_up(pl.cdiv(nc, _TARGET_ROW_BLOCKS), sub))
    tile = min(rows_budget, rows_cap)
    tm = nc if nc <= tile else tile          # tm == full NC is always legal
    return tm, thw


def adaptive_concat_pool2d(x):
    """x: (N, C, H, W) float array -> (N, 2*C, 1, 1); max channels first, then avg."""
    N, C, H, W = x.shape
    # -inf max identity requires a float dtype with an inf representation.
    assert jnp.issubdtype(x.dtype, jnp.floating), "float input required"

    NC, HW = N * C, H * W

    if HW < _MIN_HW_FOR_KERNEL:
        # Tiny feature maps: each (NC, HW) row would occupy <1 lane-tile, so the
        # Pallas path wastes most DMA / vreg lanes. Plain XLA reductions win.
        # TODO(synk): packed small-HW Pallas variant (pack ceil(128/HW) maps per row).
        mx = jnp.max(x, axis=(2, 3), keepdims=True)
        av = jnp.mean(x, axis=(2, 3), keepdims=True)
        return jnp.concatenate([mx, av], axis=1)

    x2 = x.reshape(NC, HW)                   # no-copy collapse of NCHW

    itemsize = jnp.dtype(x.dtype).itemsize
    tm, thw = _choose_tiles(NC, HW, itemsize)
    num_k = pl.cdiv(HW, thw)
    need_mask = (HW % thw) != 0
    grid = (pl.cdiv(NC, tm), num_k)

    out = pl.pallas_call(
        _make_kernel(HW, thw, need_mask, num_k),
        out_shape=jax.ShapeDtypeStruct((NC, 2), x.dtype),
        grid_spec=pltpu.PrefetchScalarGridSpec(
            num_scalar_prefetch=0,
            grid=grid,
            in_specs=[pl.BlockSpec((tm, thw), lambda i, k: (i, k))],
            out_specs=pl.BlockSpec((tm, 2), lambda i, k: (i, 0)),
            scratch_shapes=[
                pltpu.VMEM((tm, 1), jnp.float32),   # running max
                pltpu.VMEM((tm, 1), jnp.float32),   # running sum
            ],
        ),
        compiler_params=pltpu.CompilerParams(
            dimension_semantics=("parallel", "arbitrary"),
            vmem_limit_bytes=32 * 1024 * 1024,      # safe on v7x scoped VMEM too
        ),
    )(x2)

    # (NC, 2) -> (N, 2*C, 1, 1): channel block [0:C] = max, [C:2C] = mean,
    # matching torch.cat([self.mp(x), self.ap(x)], 1). Single tiny transpose
    # instead of two strided column slices + concat.
    out3 = out.reshape(N, C, 2)
    return jnp.transpose(out3, (0, 2, 1)).reshape(N, 2 * C, 1, 1)


def _reference(x):
    xf = x.astype(jnp.float32)
    mx = jnp.max(xf, axis=(2, 3), keepdims=True)
    av = jnp.mean(xf, axis=(2, 3), keepdims=True)
    return jnp.concatenate([mx, av], axis=1)


if __name__ == "__main__":
    root = jax.random.PRNGKey(0)
    k1, k2, k3, k4, k5 = jax.random.split(root, 5)

    # 1) Primary small test (typical NCHW usage), kernel path, HW multiple of 128.
    x = jax.random.normal(k1, (2, 4, 16, 16), dtype=jnp.float32)
    out = jax.block_until_ready(adaptive_concat_pool2d(x))
    assert out.shape == (2, 8, 1, 1), out.shape
    assert jnp.allclose(out, _reference(x), atol=1e-5, rtol=1e-5), "mismatch (primary)"

    # 2) Odd dims, tiny HW (63 < 128) -> XLA fallback path.
    x2 = jax.random.normal(k2, (3, 5, 7, 9), dtype=jnp.float32)
    out2 = jax.block_until_ready(adaptive_concat_pool2d(x2))
    assert out2.shape == (3, 10, 1, 1), out2.shape
    assert jnp.allclose(out2, _reference(x2), atol=1e-5, rtol=1e-5), "mismatch (odd dims)"

    # 3) Ragged row axis (NC=10, tm=8 -> clipped last row block), kernel path.
    x3 = jax.random.normal(k3, (2, 5, 16, 8), dtype=jnp.float32)
    out3 = jax.block_until_ready(adaptive_concat_pool2d(x3))
    assert out3.shape == (2, 10, 1, 1), out3.shape
    assert jnp.allclose(out3, _reference(x3), atol=1e-5, rtol=1e-5), "mismatch (ragged NC)"

    # 4) HW > 32768 -> tiled HW axis with masked (pl.when-guarded) ragged last tile.
    x4 = jax.random.normal(k4, (1, 2, 200, 200), dtype=jnp.float32)
    out4 = jax.block_until_ready(adaptive_concat_pool2d(x4))
    assert out4.shape == (1, 4, 1, 1), out4.shape
    assert jnp.allclose(out4, _reference(x4), atol=1e-4, rtol=1e-4), "mismatch (tiled HW)"

    # 5) bf16 input: max in native dtype, sum fused-widened to f32.
    x5 = jax.random.normal(k5, (2, 3, 16, 16), dtype=jnp.bfloat16)
    out5 = jax.block_until_ready(adaptive_concat_pool2d(x5))
    assert out5.shape == (2, 6, 1, 1), out5.shape
    assert jnp.allclose(out5.astype(jnp.float32), _reference(x5), atol=2e-2, rtol=2e-2), \
        "mismatch (bf16)"

    print("KERNEL_OK")
</pallas_src>

<mosaic_0001>
module attributes {stable_mosaic.version = 11 : i64} {
  func.func @kernel(%arg0: i32, %arg1: i32, %arg2: memref<8x256xf32, #tpu.memory_space<vmem>>, %arg3: memref<8x2xf32, #tpu.memory_space<vmem>>, %arg4: memref<8x1xf32, #tpu.memory_space<vmem>>, %arg5: memref<8x1xf32, #tpu.memory_space<vmem>>) attributes {dimension_semantics = [#tpu.dimension_semantics<parallel>, #tpu.dimension_semantics<arbitrary>], iteration_bounds = array<i64: 1, 1>, scalar_prefetch = 0 : i64, scratch_operands = 2 : i64, tpu.core_type = #tpu.core_type<tc>, window_params = [{transform_indices = @transform_0, window_bounds = array<i64: 8, 256>}, {transform_indices = @transform_1, window_bounds = array<i64: 8, 2>}]} {
    %c0_i32 = arith.constant 0 : i32
    %0 = arith.cmpi eq, %arg1, %c0_i32 : i32
    %1 = arith.extui %0 : i1 to i32
    %c0_i32_0 = arith.constant 0 : i32
    %2 = arith.cmpi ne, %1, %c0_i32_0 : i32
    scf.if %2 {
      %cst_13 = arith.constant 0xFF800000 : f32
      %17 = vector.broadcast %cst_13 : f32 to vector<8x1xf32>
      %c0_14 = arith.constant 0 : index
      %c0_15 = arith.constant 0 : index
      %18 = vector.load %arg4[%c0_14, %c0_15] : memref<8x1xf32, #tpu.memory_space<vmem>>, vector<8x1xf32>
      tpu.vector_store %arg4[%c0_14, %c0_15], %17 {strides = array<i32>} : memref<8x1xf32, #tpu.memory_space<vmem>>, vector<8x1xf32>,
      %cst_16 = arith.constant 0.000000e+00 : f32
      %19 = vector.broadcast %cst_16 : f32 to vector<8x1xf32>
      %c0_17 = arith.constant 0 : index
      %c0_18 = arith.constant 0 : index
      %20 = vector.load %arg5[%c0_17, %c0_18] : memref<8x1xf32, #tpu.memory_space<vmem>>, vector<8x1xf32>
      tpu.vector_store %arg5[%c0_17, %c0_18], %19 {strides = array<i32>} : memref<8x1xf32, #tpu.memory_space<vmem>>, vector<8x1xf32>,
    } else {
    }
    %c0 = arith.constant 0 : index
    %c0_1 = arith.constant 0 : index
    %3 = vector.load %arg2[%c0, %c0_1] : memref<8x256xf32, #tpu.memory_space<vmem>>, vector<8x256xf32>
    %c0_2 = arith.constant 0 : index
    %c0_3 = arith.constant 0 : index
    %4 = vector.load %arg4[%c0_2, %c0_3] : memref<8x1xf32, #tpu.memory_space<vmem>>, vector<8x1xf32>
    %cst = arith.constant dense<0xFF800000> : vector<8xf32>
    %5 = vector.multi_reduction <maximumf>, %3, %cst [1] : vector<8x256xf32> to vector<8xf32>
    %6 = vector.shape_cast %5 : vector<8xf32> to vector<8x1xf32>
    %7 = arith.maximumf %4, %6 : vector<8x1xf32>
    %c0_4 = arith.constant 0 : index
    %c0_5 = arith.constant 0 : index
    %8 = vector.load %arg4[%c0_4, %c0_5] : memref<8x1xf32, #tpu.memory_space<vmem>>, vector<8x1xf32>
    tpu.vector_store %arg4[%c0_4, %c0_5], %7 {strides = array<i32>} : memref<8x1xf32, #tpu.memory_space<vmem>>, vector<8x1xf32>,
    %c0_6 = arith.constant 0 : index
    %c0_7 = arith.constant 0 : index
    %9 = vector.load %arg5[%c0_6, %c0_7] : memref<8x1xf32, #tpu.memory_space<vmem>>, vector<8x1xf32>
    %cst_8 = arith.constant dense<0.000000e+00> : vector<8xf32>
    %10 = vector.multi_reduction <add>, %3, %cst_8 [1] : vector<8x256xf32> to vector<8xf32>
    %11 = vector.shape_cast %10 : vector<8xf32> to vector<8x1xf32>
    %12 = arith.addf %9, %11 : vector<8x1xf32>
    %c0_9 = arith.constant 0 : index
    %c0_10 = arith.constant 0 : index
    %13 = vector.load %arg5[%c0_9, %c0_10] : memref<8x1xf32, #tpu.memory_space<vmem>>, vector<8x1xf32>
    tpu.vector_store %arg5[%c0_9, %c0_10], %12 {strides = array<i32>} : memref<8x1xf32, #tpu.memory_space<vmem>>, vector<8x1xf32>,
    %c0_i32_11 = arith.constant 0 : i32
    %14 = arith.cmpi eq, %arg1, %c0_i32_11 : i32
    %15 = arith.extui %14 : i1 to i32
    %c0_i32_12 = arith.constant 0 : i32
    %16 = arith.cmpi ne, %15, %c0_i32_12 : i32
    scf.if %16 {
      %c0_13 = arith.constant 0 : index
      %c0_14 = arith.constant 0 : index
      %17 = vector.load %arg4[%c0_13, %c0_14] : memref<8x1xf32, #tpu.memory_space<vmem>>, vector<8x1xf32>
      %c0_15 = arith.constant 0 : index
      %c0_16 = arith.constant 0 : index
      %18 = vector.load %arg5[%c0_15, %c0_16] : memref<8x1xf32, #tpu.memory_space<vmem>>, vector<8x1xf32>
      %cst_17 = arith.constant 3.906250e-03 : f32
      %19 = vector.broadcast %cst_17 : f32 to vector<8x1xf32>
      %20 = arith.mulf %18, %19 : vector<8x1xf32>
      %21 = tpu.concatenate %17, %20 in 1 : vector<8x1xf32>, vector<8x1xf32> -> vector<8x2xf32>
      %c0_18 = arith.constant 0 : index
      %c0_19 = arith.constant 0 : index
      %22 = vector.load %arg3[%c0_18, %c0_19] : memref<8x2xf32, #tpu.memory_space<vmem>>, vector<8x2xf32>
      tpu.vector_store %arg3[%c0_18, %c0_19], %21 {strides = array<i32>} : memref<8x2xf32, #tpu.memory_space<vmem>>, vector<8x2xf32>,
    } else {
    }
    return
  }
  func.func @transform_0(%arg0: i32, %arg1: i32) -> (i32, i32) {
    %c0_i32 = arith.constant 0 : i32
    return %arg0, %arg1 : i32, i32
  }
  func.func @transform_1(%arg0: i32, %arg1: i32) -> (i32, i32) {
    %c0_i32 = arith.constant 0 : i32
    %c0_i32_0 = arith.constant 0 : i32
    return %arg0, %c0_i32 : i32, i32
  }
}

</mosaic_0001>

<llo_original>
// kernel: tpu_custom_call.1
$region0: #{tpu_custom_call.1}
  #allocation0 [shape = 'u32[]', space=smem, size = 0x4, offset = 0x4, fixed_abs, tag = 'smem constant byte address 0x4 - core index']
  #allocation1 [shape = 'u32[144,128]{1,0:T(1,128)}', space=vmem, size = 0x12000, scoped, tag = 'internal scratch']
  #allocation2 [shape = 'f32[8,1]{1,0:T(8,128)}', space=vmem, size = 0x1000, scoped, tag = 'scratch operand']
  #allocation3 [shape = 'f32[8,1]{1,0:T(8,128)}', space=vmem, size = 0x1000, scoped, tag = 'scratch operand']
  %s0 = inlined_call_operand.hbm [shape: f32[8,256], index: 0, kind: input, shape index: {}]
  %s1 = inlined_call_operand.vmem [shape: f32[8,2], index: 1, kind: output, shape index: {}]
  %s2 = sld [smem:[#allocation0]]
  $region26: #{tpu_custom_call.1} parent=0
    _
  %s4 = ssub.s32 1, %s2
  %s5 = scalar_select 0, %s4, %s2
  $region1: #{tpu_custom_call.1} parent=0
    #allocation4 [shape = 'u8[8192]{0}', space=vmem, size = 0x2000, scoped, tag = 'input window, operand 0, single buffered']
    #allocation5 [shape = 's32[1]{0}', space=sflag, size = 0x4, scoped, tag = 'scoped memory for tpu_custom_call.1']
    %6 = vsyncpa [#allocation5], 0
    // Predicated region
    $region2: #{tpu_custom_call.1} parent=1 // pred_check
      _
    $region3: #{tpu_custom_call.1} parent=1 // pred_check_branch
      %8 = sbr.rel (0) target = $region5
    $region4: #{tpu_custom_call.1} parent=1 // pred_region
      %s10 = ssub.s32 256, 256
      %11 = vsyncadd [#allocation5], %s10
      %s13 = sshll.u32 [#allocation4], 4
      %s14 = int_to_ptr.vmem [resolvable:$true] %s13
      %16 = dma.hbm_to_vmem [thread:$0]  %s0, 256, %s14, [#allocation5]
    $region5: #{tpu_custom_call.1} parent=1 // pred_fallthru
      _
    // Predicated region
    $region6: #{tpu_custom_call.1} parent=1 // pred_check
      _
    $region7: #{tpu_custom_call.1} parent=1 // pred_check_branch
      %18 = sbr.rel (0) target = $region9
    $region8: #{tpu_custom_call.1} parent=1 // pred_region
      %19 = dma.done [#allocation5], 256
    $region9: #{tpu_custom_call.1} parent=1 // pred_fallthru
      _
    %p20 = scmp.eq.s32.totalorder 0, 0
    // Predicated region
    $region10: #{tpu_custom_call.1} parent=1 // pred_check
      %p21 = pneg %p20
    $region11: #{tpu_custom_call.1} parent=1 // pred_check_branch
      %23 = sbr.rel (%p21) target = $region13
    $region12: #{tpu_custom_call.1} parent=1 // pred_region
      %vm24 = vcmask 7168
      %25 = vst.msk [vmem:[#allocation2] sm:$0xff] %vm24, -inf
      %26 = vst.msk [vmem:[#allocation3] sm:$0xff] %vm24, 0.0
    $region13: #{tpu_custom_call.1} parent=1 // pred_fallthru
      _
    %v27 = vld [vmem:[#allocation4] sm:$0xff]
    %v28 = vld [vmem:[#allocation4 + $0x8] sm:$0xff]
    %v29 = vld [vmem:[#allocation2] sm:$0xff]
    %v30 = vmax.f32 %v27, %v28
    %31 = vmax.xlane.f32.xlu0 %v30
    %v32 = vpop.xlane.xlu0 %31
    %v33 = vmax.f32 %v29, %v32
    %vm34 = vcmask 7168
    %35 = vst.msk [vmem:[#allocation2] sm:$0xff] %vm34, %v33
    %v36 = vld [vmem:[#allocation3] sm:$0xff]
    %v37 = vadd.f32 %v27, %v28
    %38 = vadd.xlane.f32.xlu0 %v37
    %v39 = vpop.xlane.xlu0 %38
    %v40 = vadd.f32 %v36, %v39
    %41 = vst.msk [vmem:[#allocation3] sm:$0xff] %vm34, %v40
    // Predicated region
    $region14: #{tpu_custom_call.1} parent=1 // pred_check
      %p42 = pneg %p20
    $region15: #{tpu_custom_call.1} parent=1 // pred_check_branch
      %44 = sbr.rel (%p42) target = $region17
    $region16: #{tpu_custom_call.1} parent=1 // pred_region
      %v45 = vld [vmem:[#allocation2] sm:$0xff]
      %v46 = vld [vmem:[#allocation3] sm:$0xff]
      %v47 = vmul.f32 %v46, 0.00390625
      %49 = vrot.lane.b32.xlu0 %v47, 1
      %v50 = vpop.permute.xlu0 %49
      %v52 = vsel %vm34, %v45, %v50
      %vm53 = vcmask 15360
      %54 = vst.msk [vmem:[%s1] sm:$0xff] %vm53, %v52
    $region17: #{tpu_custom_call.1} parent=1 // pred_fallthru
      _
    // Predicated region
    $region18: #{tpu_custom_call.1} parent=1 // pred_check
      _
    $region19: #{tpu_custom_call.1} parent=1 // pred_check_branch
      %56 = sbr.rel (0) target = $region21
    $region20: #{tpu_custom_call.1} parent=1 // pred_region
      _
    $region21: #{tpu_custom_call.1} parent=1 // pred_fallthru
      _
    // Predicated region
    $region22: #{tpu_custom_call.1} parent=1 // pred_check
      _
    $region23: #{tpu_custom_call.1} parent=1 // pred_check_branch
      %58 = sbr.rel (0) target = $region25
    $region24: #{tpu_custom_call.1} parent=1 // pred_region
      _
    $region25: #{tpu_custom_call.1} parent=1 // pred_fallthru
      _
    %59 = vsyncpa [#allocation5], 1

</llo_original>
